<compile_context>
chip_gen: v7x
topology: tpu7x:2x2x1
jax: 0.10.0
libtpu: 0.0.40
codegen_flags: <defaults>
</compile_context>

<pallas_src>
import functools

import jax
import jax.numpy as jnp
from jax import lax
from jax.experimental import pallas as pl
from jax.experimental.pallas import tpu as pltpu


def _round_up(x, m):
    return (x + m - 1) // m * m


def _cdiv(a, b):
    return -(-a // b)


# ----------------------------------------------------------------------------
# Squash (shared by both kernels): along the atom axis of [Co, Ao, TP], f32.
# ----------------------------------------------------------------------------
def _squash(preact):
    """(sqn/(1+sqn)) * preact / sqrt(sqn+1e-7) folded into one broadcast scale."""
    sqn = jnp.sum(preact * preact, axis=1, keepdims=True)            # [Co,1,TP]
    scale = sqn * lax.rsqrt(sqn + 1e-7) * pl.reciprocal(1.0 + sqn, approx=True)
    return preact * scale


# ----------------------------------------------------------------------------
# Fast path kernel (routings == 1, sigmoid routing): one matmul + squash.
#   p_ref : [AK3p, TP]  bf16   im2col patches, Ci pre-summed, bias ones-row
#   w_ref : [CoAo, AK3p] bf16  0.5*W with bias column folded in
#   o_ref : [Co, Ao, TP]       bf16 (intermediate layer) or f32 (final layer)
# ----------------------------------------------------------------------------
def _caps_fast_kernel(p_ref, w_ref, o_ref, *, num_capsule, num_atoms):
    tp = o_ref.shape[-1]
    preact = jnp.dot(w_ref[...], p_ref[...],
                     preferred_element_type=jnp.float32)              # [CoAo,TP]
    preact = preact.reshape(num_capsule, num_atoms, tp)
    o_ref[...] = _squash(preact).astype(o_ref.dtype)


# ----------------------------------------------------------------------------
# General kernel (routings > 1 or softmax routing): per-Ci votes + routing.
#   p_ref : [1, Ci, AK3p, TP] bf16 ; w_ref : [CoAo, AK3p] bf16
#   b_ref : [Co, Ao, 1] f32 ; o_ref : [1, Co, Ao, TP]
# ----------------------------------------------------------------------------
def _caps_routing_kernel(p_ref, w_ref, b_ref, o_ref, *,
                         num_capsule, num_atoms, routings, sigmoid_routing):
    ci = p_ref.shape[1]
    co, ao = num_capsule, num_atoms
    tp = o_ref.shape[-1]
    w = w_ref[...]
    bias = b_ref[...]

    votes = [jnp.dot(w, p_ref[0, c], preferred_element_type=jnp.float32)
             for c in range(ci)]
    v = jnp.stack(votes, axis=0).reshape(ci, co, ao, tp)              # [Ci,Co,Ao,TP]
    logits = jnp.zeros((ci, co, 1, tp), jnp.float32)
    act = None
    for r in range(routings):                       # routings is small & static
        if sigmoid_routing:
            route = jax.nn.sigmoid(logits)
        else:
            route = jax.nn.softmax(logits, axis=1)
        preact = jnp.sum(route * v, axis=0) + bias                    # [Co,Ao,TP]
        act = _squash(preact)
        if r < routings - 1:
            logits = logits + jnp.sum(v * act[None], axis=2, keepdims=True)
    o_ref[0] = act.astype(o_ref.dtype)


# ----------------------------------------------------------------------------
# im2col helpers (all in bf16; flattened spatial P lives in the lane dim)
# ----------------------------------------------------------------------------
def _out_dims(D, H, W, k, stride, pad):
    return ((D + 2 * pad - k) // stride + 1,
            (H + 2 * pad - k) // stride + 1,
            (W + 2 * pad - k) // stride + 1)


def _im2col_slices(xp, k, stride, Dp, Hp, Wp):
    cols = []
    for kd in range(k):
        for kh in range(k):
            for kw in range(k):
                cols.append(xp[...,
                               kd:kd + stride * (Dp - 1) + 1:stride,
                               kh:kh + stride * (Hp - 1) + 1:stride,
                               kw:kw + stride * (Wp - 1) + 1:stride])
    return cols


def _im2col_flat(x_t, k, stride, pad):
    """x_t: [A, B, D, H, W] bf16 -> [A*k^3, B*P] bf16 (row order (a,kd,kh,kw))."""
    A, B, D, H, W = x_t.shape
    xp = jnp.pad(x_t, ((0, 0), (0, 0), (pad, pad), (pad, pad), (pad, pad)))
    Dp, Hp, Wp = _out_dims(D, H, W, k, stride, pad)
    cols = _im2col_slices(xp, k, stride, Dp, Hp, Wp)   # each [A,B,Dp,Hp,Wp]
    patches = jnp.stack(cols, axis=1)                  # [A, K3, B, Dp, Hp, Wp]
    return patches.reshape(A * k ** 3, B * Dp * Hp * Wp), (Dp, Hp, Wp)


def _im2col_per_caps(x, k, stride, pad):
    """x: [B, Ci, A, D, H, W] bf16 -> [B, Ci, A*k^3, P] bf16 (general path)."""
    B, Ci, A, D, H, W = x.shape
    xp = jnp.pad(x, ((0, 0), (0, 0), (0, 0), (pad, pad), (pad, pad), (pad, pad)))
    Dp, Hp, Wp = _out_dims(D, H, W, k, stride, pad)
    cols = _im2col_slices(xp, k, stride, Dp, Hp, Wp)   # each [B,Ci,A,Dp,Hp,Wp]
    patches = jnp.stack(cols, axis=3)                  # [B,Ci,A,K3,Dp,Hp,Wp]
    return patches.reshape(B, Ci, A * k ** 3, Dp * Hp * Wp), (Dp, Hp, Wp)


# ----------------------------------------------------------------------------
# Tile selection: lane-dense, double-buffer-aware, v7x-safe VMEM budget,
# and >= 2 parallel grid points when the lane extent allows it.
# ----------------------------------------------------------------------------
def _choose_tile(P, bytes_per_col, *, max_p_tile=4096,
                 budget_bytes=20 << 20, min_parallel=2):
    TP = min(max_p_tile, _round_up(P, 128))
    while TP > 128 and 2 * bytes_per_col * TP > budget_bytes:
        TP = _round_up(TP // 2, 128)
    if P > 128 and _cdiv(P, TP) < min_parallel:
        TP = max(128, _round_up(_cdiv(P, min_parallel), 128))
    return TP


# ----------------------------------------------------------------------------
# Fast path: one ConvCapsuleLayer3D with routings==1 + sigmoid routing.
# ----------------------------------------------------------------------------
def _conv_caps_fast(x, weight, bias, *, kernel_size, stride, padding,
                    num_capsule, num_atoms, out_dtype, max_p_tile=4096):
    B, Ci, A, D, H, W = x.shape
    k = kernel_size
    Co, Ao = num_capsule, num_atoms
    CoAo = Co * Ao

    # sigmoid(0) == 0.5 for every input capsule; conv/im2col are linear, so the
    # input-capsule sum commutes with everything -> sum over Ci *before* im2col
    # (the expanded tensor shrinks by Ci). Cast to bf16 before any expansion.
    x_sum = jnp.sum(x, axis=1).astype(jnp.bfloat16)       # [B, A, D, H, W]
    x_t = jnp.transpose(x_sum, (1, 0, 2, 3, 4))           # [A, B, D, H, W]
    patches, (Dp, Hp, Wp) = _im2col_flat(x_t, k, stride, padding)

    P = B * Dp * Hp * Wp
    AK3 = A * k ** 3
    # +1 row for the bias fold, rounded up for clean bf16 sublane packing.
    AK3p = _round_up(AK3 + 1, 16)

    # Augmented ones-row (bias fold) + zero rows to AK3p; lane pad to Pp.
    patches = jnp.concatenate(
        [patches,
         jnp.ones((1, P), jnp.bfloat16),
         jnp.zeros((AK3p - AK3 - 1, P), jnp.bfloat16)], axis=0)

    out_bytes = jnp.dtype(out_dtype).itemsize
    TP = _choose_tile(P, AK3p * 2 + CoAo * out_bytes, max_p_tile=max_p_tile)
    Pp = _round_up(P, TP)
    patches = jnp.pad(patches, ((0, 0), (0, Pp - P)))

    # Weight: fold the exact 0.5 routing constant (power of two, lossless in
    # bf16) and append the capsule-bias column matching the ones-row.
    wmat = 0.5 * weight.reshape(CoAo, AK3)
    wmat = jnp.concatenate(
        [wmat, bias.reshape(CoAo, 1),
         jnp.zeros((CoAo, AK3p - AK3 - 1), wmat.dtype)], axis=1)
    wmat = wmat.astype(jnp.bfloat16)

    kernel = functools.partial(_caps_fast_kernel,
                               num_capsule=Co, num_atoms=Ao)
    act = pl.pallas_call(
        kernel,
        out_shape=jax.ShapeDtypeStruct((Co, Ao, Pp), out_dtype),
        grid=(Pp // TP,),
        in_specs=[
            pl.BlockSpec((AK3p, TP), lambda p: (0, p)),
            pl.BlockSpec((CoAo, AK3p), lambda p: (0, 0)),
        ],
        out_specs=pl.BlockSpec((Co, Ao, TP), lambda p: (0, 0, p)),
        compiler_params=pltpu.CompilerParams(
            dimension_semantics=("parallel",),
            vmem_limit_bytes=32 << 20),
    )(patches, wmat)

    act = act[..., :P].reshape(Co, Ao, B, Dp, Hp, Wp)
    return jnp.transpose(act, (2, 0, 1, 3, 4, 5))          # [B,Co,Ao,Dp,Hp,Wp]


# ----------------------------------------------------------------------------
# General path: per-input-capsule votes + dynamic routing (routings>1/softmax).
# ----------------------------------------------------------------------------
def _conv_caps_general(x, weight, bias, *, kernel_size, stride, padding,
                       num_capsule, num_atoms, routings, sigmoid_routing,
                       out_dtype, max_p_tile=1024):
    B, Ci, A, D, H, W = x.shape
    k = kernel_size
    Co, Ao = num_capsule, num_atoms
    CoAo = Co * Ao

    x = x.astype(jnp.bfloat16)                        # bf16 before any expansion
    patches, (Dp, Hp, Wp) = _im2col_per_caps(x, k, stride, padding)
    P = Dp * Hp * Wp
    AK3 = A * k ** 3
    AK3p = _round_up(AK3, 16)

    out_bytes = jnp.dtype(out_dtype).itemsize
    TP = _choose_tile(P, Ci * AK3p * 2 + CoAo * out_bytes,
                      max_p_tile=max_p_tile)
    Pp = _round_up(P, TP)
    patches = jnp.pad(patches, ((0, 0), (0, 0), (0, AK3p - AK3), (0, Pp - P)))

    wmat = weight.reshape(CoAo, AK3)
    wmat = jnp.pad(wmat, ((0, 0), (0, AK3p - AK3))).astype(jnp.bfloat16)
    bias3 = bias.reshape(Co, Ao, 1).astype(jnp.float32)

    kernel = functools.partial(
        _caps_routing_kernel, num_capsule=Co, num_atoms=Ao,
        routings=routings, sigmoid_routing=sigmoid_routing)

    act = pl.pallas_call(
        kernel,
        out_shape=jax.ShapeDtypeStruct((B, Co, Ao, Pp), out_dtype),
        grid=(B, Pp // TP),
        in_specs=[
            pl.BlockSpec((1, Ci, AK3p, TP), lambda b, p: (b, 0, 0, p)),
            pl.BlockSpec((CoAo, AK3p), lambda b, p: (0, 0)),
            pl.BlockSpec((Co, Ao, 1), lambda b, p: (0, 0, 0)),
        ],
        out_specs=pl.BlockSpec((1, Co, Ao, TP), lambda b, p: (b, 0, 0, p)),
        compiler_params=pltpu.CompilerParams(
            dimension_semantics=("parallel", "parallel"),
            vmem_limit_bytes=32 << 20),
    )(patches, wmat, bias3)

    return act[..., :P].reshape(B, Co, Ao, Dp, Hp, Wp)


def conv_capsule_layer_3d(x, weight, bias, *, kernel_size, stride, padding,
                          num_capsule, num_atoms, routings, sigmoid_routing,
                          out_dtype=jnp.float32):
    """One ConvCapsuleLayer3D (constrained, non-transposed).

    x      : [B, Ci, A, D, H, W]
    weight : [Co*Ao, A, k, k, k]   (shared Conv3d weight, no conv bias)
    bias   : [Co, Ao]              (capsule bias, const 0.1 init)
    returns: [B, Co, Ao, D', H', W']  in out_dtype
    """
    if routings == 1 and sigmoid_routing:
        return _conv_caps_fast(
            x, weight, bias, kernel_size=kernel_size, stride=stride,
            padding=padding, num_capsule=num_capsule, num_atoms=num_atoms,
            out_dtype=out_dtype)
    return _conv_caps_general(
        x, weight, bias, kernel_size=kernel_size, stride=stride,
        padding=padding, num_capsule=num_capsule, num_atoms=num_atoms,
        routings=routings, sigmoid_routing=sigmoid_routing,
        out_dtype=out_dtype)


# ----------------------------------------------------------------------------
# EncoderCaps = DoubleCaps(strides=[2, 1])
# ----------------------------------------------------------------------------
def encoder_caps_forward(x, params, *, kernel_size, num_capsule, num_atoms,
                         strides=(2, 1), routings=1, sigmoid_routing=True):
    # calc_same_padding for a non-transposed conv of this kernel size.
    pad = (kernel_size - 1) // 2
    h = x
    n = len(strides)
    for i, stride in enumerate(strides):
        w, b = params[i]
        # Intermediate capsule activations stay bf16 (next layer casts anyway);
        # only the final encoder output is f32.
        out_dtype = jnp.float32 if i == n - 1 else jnp.bfloat16
        h = conv_capsule_layer_3d(
            h, w, b, kernel_size=kernel_size, stride=stride, padding=pad,
            num_capsule=num_capsule, num_atoms=num_atoms,
            routings=routings, sigmoid_routing=sigmoid_routing,
            out_dtype=out_dtype)
    return h


def init_encoder_caps_params(key, *, kernel_size, input_num_atoms,
                             num_capsule, num_atoms):
    """Deterministic synthetic init (He-normal conv weights, 0.1 capsule bias)."""
    params = []
    in_atoms = [input_num_atoms, num_atoms]
    for i in range(2):
        key, wk = jax.random.split(key)
        fan_in = in_atoms[i] * kernel_size ** 3
        w = jax.random.normal(
            wk,
            (num_capsule * num_atoms, in_atoms[i],
             kernel_size, kernel_size, kernel_size),
            dtype=jnp.float32) * jnp.sqrt(2.0 / fan_in)
        b = jnp.full((num_capsule, num_atoms), 0.1, jnp.float32)
        params.append((w, b))
    return params


if __name__ == "__main__":
    key = jax.random.PRNGKey(0)
    kernel_size = 3
    input_num_capsule, input_num_atoms = 1, 4
    num_capsule, num_atoms = 2, 8
    B, D, H, W = 2, 8, 8, 8

    kx, kp = jax.random.split(key)
    # x: [B, input_num_capsule, input_num_atoms, D, H, W]
    x = jax.random.normal(
        kx, (B, input_num_capsule, input_num_atoms, D, H, W), dtype=jnp.float32)
    params = init_encoder_caps_params(
        kp, kernel_size=kernel_size, input_num_atoms=input_num_atoms,
        num_capsule=num_capsule, num_atoms=num_atoms)

    out = encoder_caps_forward(
        x, params, kernel_size=kernel_size, num_capsule=num_capsule,
        num_atoms=num_atoms, strides=(2, 1), routings=1, sigmoid_routing=True)
    out = jax.block_until_ready(out)

    assert out.shape == (B, num_capsule, num_atoms, D // 2, H // 2, W // 2), out.shape
    assert out.dtype == jnp.float32
    assert bool(jnp.all(jnp.isfinite(out)))
    print("KERNEL_OK")
</pallas_src>

<mosaic_0001>
module attributes {stable_mosaic.version = 11 : i64} {
  func.func @_caps_fast_kernel(%arg0: i32, %arg1: memref<112x128xbf16, #tpu.memory_space<vmem>>, %arg2: memref<16x112xbf16, #tpu.memory_space<vmem>>, %arg3: memref<2x8x128xbf16, #tpu.memory_space<vmem>>) attributes {dimension_semantics = [#tpu.dimension_semantics<parallel>], iteration_bounds = array<i64: 1>, scalar_prefetch = 0 : i64, scratch_operands = 0 : i64, tpu.core_type = #tpu.core_type<tc>, window_params = [{transform_indices = @transform_0, window_bounds = array<i64: 112, 128>}, {pipeline_mode = #tpu.pipeline_mode<synchronous>, transform_indices = @transform_1, window_bounds = array<i64: 16, 112>}, {transform_indices = @transform_2, window_bounds = array<i64: 2, 8, 128>}]} {
    %c0 = arith.constant 0 : index
    %c0_0 = arith.constant 0 : index
    %0 = vector.load %arg2[%c0, %c0_0] : memref<16x112xbf16, #tpu.memory_space<vmem>>, vector<16x112xbf16>
    %c0_1 = arith.constant 0 : index
    %c0_2 = arith.constant 0 : index
    %1 = vector.load %arg1[%c0_1, %c0_2] : memref<112x128xbf16, #tpu.memory_space<vmem>>, vector<112x128xbf16>
    %cst = arith.constant dense<0.000000e+00> : vector<16x128xf32>
    %2 = tpu.matmul %0, %1, %cst {dimension_numbers = #tpu.dot_dimension_numbers<[1], [0], [0], [1], [0, 0, 1, 1], [], []>} : vector<16x112xbf16>, vector<112x128xbf16>, vector<16x128xf32> -> vector<16x128xf32>
    %3 = vector.shape_cast %2 : vector<16x128xf32> to vector<2x8x128xf32>
    %4 = arith.mulf %3, %3 : vector<2x8x128xf32>
    %cst_3 = arith.constant dense<0.000000e+00> : vector<2x128xf32>
    %5 = vector.multi_reduction <add>, %4, %cst_3 [1] : vector<2x8x128xf32> to vector<2x128xf32>
    %6 = vector.shape_cast %5 : vector<2x128xf32> to vector<2x1x128xf32>
    %cst_4 = arith.constant 1.000000e-07 : f32
    %7 = vector.broadcast %cst_4 : f32 to vector<2x1x128xf32>
    %8 = arith.addf %6, %7 : vector<2x1x128xf32>
    %9 = math.rsqrt %8 : vector<2x1x128xf32>
    %10 = arith.mulf %6, %9 : vector<2x1x128xf32>
    %cst_5 = arith.constant 1.000000e+00 : f32
    %11 = vector.broadcast %cst_5 : f32 to vector<2x1x128xf32>
    %12 = arith.addf %11, %6 : vector<2x1x128xf32>
    %13 = tpu.reciprocal %12 {approx = true} : vector<2x1x128xf32> -> vector<2x1x128xf32>
    %14 = arith.mulf %10, %13 : vector<2x1x128xf32>
    %15 = vector.broadcast %14 : vector<2x1x128xf32> to vector<2x8x128xf32>
    %16 = arith.mulf %3, %15 : vector<2x8x128xf32>
    %17 = arith.truncf %16 : vector<2x8x128xf32> to vector<2x8x128xbf16>
    %c0_6 = arith.constant 0 : index
    %c0_7 = arith.constant 0 : index
    %c0_8 = arith.constant 0 : index
    %18 = vector.load %arg3[%c0_6, %c0_7, %c0_8] : memref<2x8x128xbf16, #tpu.memory_space<vmem>>, vector<2x8x128xbf16>
    tpu.vector_store %arg3[%c0_6, %c0_7, %c0_8], %17 {strides = array<i32>} : memref<2x8x128xbf16, #tpu.memory_space<vmem>>, vector<2x8x128xbf16>,
    return
  }
  func.func @transform_0(%arg0: i32) -> (i32, i32) {
    %c0_i32 = arith.constant 0 : i32
    %c0_i32_0 = arith.constant 0 : i32
    return %c0_i32, %arg0 : i32, i32
  }
  func.func @transform_1(%arg0: i32) -> (i32, i32) {
    %c0_i32 = arith.constant 0 : i32
    %c0_i32_0 = arith.constant 0 : i32
    %c0_i32_1 = arith.constant 0 : i32
    return %c0_i32, %c0_i32_0 : i32, i32
  }
  func.func @transform_2(%arg0: i32) -> (i32, i32, i32) {
    %c0_i32 = arith.constant 0 : i32
    %c0_i32_0 = arith.constant 0 : i32
    %c0_i32_1 = arith.constant 0 : i32
    return %c0_i32, %c0_i32_0, %arg0 : i32, i32, i32
  }
}

</mosaic_0001>

<llo_original>
// kernel: tpu_custom_call.1
$region0: #{tpu_custom_call.1}
  #allocation0 [shape = 'u32[]', space=smem, size = 0x4, offset = 0x4, fixed_abs, tag = 'smem constant byte address 0x4 - core index']
  #allocation1 [shape = 'u32[144,128]{1,0:T(1,128)}', space=vmem, size = 0x12000, scoped, tag = 'internal scratch']
  %s0 = inlined_call_operand.hbm [shape: bf16[112,128], index: 0, kind: input, shape index: {}]
  %s1 = inlined_call_operand.hbm [shape: bf16[16,112], index: 1, kind: input, shape index: {}]
  %s2 = inlined_call_operand.hbm [shape: bf16[2,8,128], index: 2, kind: output, shape index: {}]
  %s3 = sld [smem:[#allocation0]]
  $region26: #{tpu_custom_call.1} parent=0
    _
  %s5 = ssub.s32 1, %s3
  %s6 = scalar_select 0, %s5, %s3
  $region1: #{tpu_custom_call.1} parent=0
    #allocation2 [shape = 'u8[28672]{0}', space=vmem, size = 0x7000, scoped, tag = 'input window, operand 0, single buffered']
    #allocation3 [shape = 's32[1]{0}', space=sflag, size = 0x4, scoped, tag = 'scoped memory for tpu_custom_call.1']
    #allocation4 [shape = 's32[1]{0}', space=sflag, size = 0x4, scoped, tag = 'scoped memory for tpu_custom_call.1']
    #allocation5 [shape = 'u8[4096]{0}', space=vmem, size = 0x1000, scoped, tag = 'input window, operand 1, single buffered']
    #allocation6 [shape = 's32[1]{0}', space=sflag, size = 0x4, scoped, tag = 'scoped memory for tpu_custom_call.1']
    #allocation7 [shape = 'u8[4096]{0}', space=vmem, size = 0x1000, scoped, tag = 'output window, operand 0, single buffered']
    %7 = vsyncpa [#allocation3], 0
    %8 = vsyncpa [#allocation6], 0
    %9 = vsyncpa [#allocation4], 0
    // Predicated region
    $region2: #{tpu_custom_call.1} parent=1 // pred_check
      _
    $region3: #{tpu_custom_call.1} parent=1 // pred_check_branch
      %11 = sbr.rel (0) target = $region5
    $region4: #{tpu_custom_call.1} parent=1 // pred_region
      %s13 = ssub.s32 896, 896
      %14 = vsyncadd [#allocation3], %s13
      %s15 = sshll.u32 [#allocation2], 4
      %s16 = int_to_ptr.vmem [resolvable:$true] %s15
      %21 = dma.hbm_to_vmem [thread:$0]  %s0, 896, %s16, [#allocation3], 64, 64, 4
    $region5: #{tpu_custom_call.1} parent=1 // pred_fallthru
      _
    // Predicated region
    $region6: #{tpu_custom_call.1} parent=1 // pred_check
      _
    $region7: #{tpu_custom_call.1} parent=1 // pred_check_branch
      %23 = sbr.rel (0) target = $region9
    $region8: #{tpu_custom_call.1} parent=1 // pred_region
      %s25 = ssub.s32 128, 128
      %26 = vsyncadd [#allocation6], %s25
      %s27 = sshll.u32 [#allocation5], 4
      %s28 = int_to_ptr.vmem [resolvable:$true] %s27
      %33 = dma.hbm_to_vmem [thread:$0]  %s1, 128, %s28, [#allocation6], 64, 64, 4
    $region9: #{tpu_custom_call.1} parent=1 // pred_fallthru
      _
    // Predicated region
    $region10: #{tpu_custom_call.1} parent=1 // pred_check
      _
    $region11: #{tpu_custom_call.1} parent=1 // pred_check_branch
      %35 = sbr.rel (0) target = $region13
    $region12: #{tpu_custom_call.1} parent=1 // pred_region
      %36 = dma.done [#allocation3], 896
    $region13: #{tpu_custom_call.1} parent=1 // pred_fallthru
      _
    // Predicated region
    $region14: #{tpu_custom_call.1} parent=1 // pred_check
      _
    $region15: #{tpu_custom_call.1} parent=1 // pred_check_branch
      %38 = sbr.rel (0) target = $region17
    $region16: #{tpu_custom_call.1} parent=1 // pred_region
      %39 = dma.done [#allocation6], 128
    $region17: #{tpu_custom_call.1} parent=1 // pred_fallthru
      _
    %v41 = vld [vmem:[#allocation5] sm:$0xf]
    %v42 = vld [vmem:[#allocation5 + $0x4] sm:$0xf]
    %v43 = vld [vmem:[#allocation2] sm:$0xf]
    %v44 = vld [vmem:[#allocation2 + $0x4] sm:$0xf]
    %v45 = vld [vmem:[#allocation2 + $0x8] sm:$0xf]
    %v46 = vld [vmem:[#allocation2 + $0xc] sm:$0xf]
    %v47 = vld [vmem:[#allocation2 + $0x10] sm:$0xf]
    %v48 = vld [vmem:[#allocation2 + $0x14] sm:$0xf]
    %v49 = vld [vmem:[#allocation2 + $0x18] sm:$0xf]
    %v50 = vld [vmem:[#allocation2 + $0x1c] sm:$0xf]
    %v51 = vld [vmem:[#allocation2 + $0x20] sm:$0xf]
    %v52 = vld [vmem:[#allocation2 + $0x24] sm:$0xf]
    %v53 = vld [vmem:[#allocation2 + $0x28] sm:$0xf]
    %v54 = vld [vmem:[#allocation2 + $0x2c] sm:$0xf]
    %v55 = vld [vmem:[#allocation2 + $0x30] sm:$0xf]
    %v56 = vld [vmem:[#allocation2 + $0x34] sm:$0xf]
    %v59 = vunpack.c.l.b16 %v41
    %v60 = vunpack.c.l.b16 %v42
    %v61 = vpack.c.b16 %v60, %v59
    %v76 = vunpack.c.l.b16 %v43
    %v77 = vunpack.c.l.b16 %v44
    %v78 = vunpack.c.l.b16 %v45
    %v79 = vunpack.c.l.b16 %v46
    %v80 = vunpack.c.l.b16 %v47
    %v81 = vunpack.c.l.b16 %v48
    %v82 = vunpack.c.l.b16 %v49
    %v83 = vunpack.c.l.b16 %v50
    %v84 = vunpack.c.l.b16 %v51
    %v85 = vunpack.c.l.b16 %v52
    %v86 = vunpack.c.l.b16 %v53
    %v87 = vunpack.c.l.b16 %v54
    %v88 = vunpack.c.l.b16 %v55
    %v89 = vunpack.c.l.b16 %v56
    %v90 = vpack.c.b16 %v77, %v76
    %v91 = vpack.c.b16 %v79, %v78
    %v92 = vpack.c.b16 %v81, %v80
    %v93 = vpack.c.b16 %v83, %v82
    %v94 = vpack.c.b16 %v85, %v84
    %v95 = vpack.c.b16 %v87, %v86
    %v96 = vpack.c.b16 %v89, %v88
    %vm104 = vcmask 916480
    %v106 = vsel %vm104, %v61, 0
    %108 = vmatprep.subr.bf16.mxu0 0
    %109 = vmatpush1.bf16.msra.mxu0 %v90
    %110 = vmatprep.subr.bf16.mxu0 0
    %111 = vmatpush1.bf16.msra.mxu0 %v91
    %112 = vmatprep.subr.bf16.mxu0 0
    %113 = vmatpush1.bf16.msra.mxu0 %v92
    %114 = vmatprep.subr.bf16.mxu0 0
    %115 = vmatpush1.bf16.msra.mxu0 %v93
    %116 = vmatprep.subr.bf16.mxu0 0
    %117 = vmatpush1.bf16.msra.mxu0 %v94
    %118 = vmatprep.subr.bf16.mxu0 0
    %119 = vmatpush1.bf16.msra.mxu0 %v95
    %120 = vmatprep.subr.bf16.mxu0 0
    %121 = vmatpush1.bf16.msra.mxu0 %v96
    %122 = vmatprep.subr.bf16.mxu0 0
    %123 = vmatpush1.bf16.msra.mxu0 0
    %124 = vmatprep.subr.bf16.mxu0 0
    %125 = vmatpush1.bf16.msra.mxu0 0
    %126 = vmatprep.subr.bf16.mxu0 0
    %127 = vmatpush1.bf16.msra.mxu0 0
    %128 = vmatprep.subr.bf16.mxu0 0
    %129 = vmatpush1.bf16.msra.mxu0 0
    %130 = vmatprep.subr.bf16.mxu0 0
    %131 = vmatpush1.bf16.msra.mxu0 0
    %132 = vmatprep.subr.bf16.mxu0 0
    %133 = vmatpush1.bf16.msra.mxu0 0
    %134 = vmatprep.subr.bf16.mxu0 0
    %135 = vmatpush1.bf16.msra.mxu0 0
    %136 = vmatprep.subr.bf16.mxu0 0
    %137 = vmatpush1.bf16.msra.mxu0 0
    %138 = vmatprep.subr.bf16.mxu0 0
    %139 = vmatpush1.bf16.msra.mxu0 0
    %140 = vmatprep.mubr.bf16.mxu0 0
    %141 = vmatmul.mubr.bf16.gmra.mrb[0].mxu0 %v106
    %v142 = vpop.f32.mrb[0].mxu0
    %v143 = vadd.f32 0.0, %v142
    %v144 = vpop.f32.mrb[0].mxu0
    %v145 = vpop.f32.mrb[0].mxu0
    %v146 = vadd.f32 0.0, %v145
    %v147 = vpop.f32.mrb[0].mxu0
    %148 = vdwg.mxu0
    %v149 = vmul.f32 %v143, %v143
    %v150 = vmul.f32 %v146, %v146
    %v151 = vrot.slane %v149, 4
    %v152 = vadd.f32 %v149, %v151
    %v153 = vrot.slane %v152, 2
    %v154 = vadd.f32 %v152, %v153
    %v155 = vrot.slane %v154, 1
    %v156 = vadd.f32 %v154, %v155
    %v157 = vrot.slane %v150, 4
    %v158 = vadd.f32 %v150, %v157
    %v159 = vrot.slane %v158, 2
    %v160 = vadd.f32 %v158, %v159
    %v161 = vrot.slane %v160, 1
    %v162 = vadd.f32 %v160, %v161
    %v163 = vadd.f32 %v156, 1e-07
    %v164 = vadd.f32 %v162, 1e-07
    %v165 = vrsqrt.pop %v163
    %v166 = vrsqrt.pop %v164
    %v167 = vmul.f32 %v156, %v165
    %v168 = vmul.f32 %v162, %v166
    %v169 = vadd.f32 %v156, 1.0
    %v170 = vadd.f32 %v162, 1.0
    %v171 = vrcp.pop %v169
    %v172 = vrcp.pop %v170
    %v173 = vmul.f32 %v167, %v171
    %v174 = vmul.f32 %v168, %v172
    %v175 = vmul.f32 %v143, %v173
    %v176 = vmul.f32 %v146, %v174
    %v177 = vpack.c.bf16 %v175, %v175
    %v178 = vpack.c.bf16 %v176, %v176
    %179 = vst [vmem:[#allocation7] sm:$0xf] %v177
    %180 = vst [vmem:[#allocation7 + $0x4] sm:$0xf] %v178
    // Predicated region
    $region18: #{tpu_custom_call.1} parent=1 // pred_check
      _
    $region19: #{tpu_custom_call.1} parent=1 // pred_check_branch
      %182 = sbr.rel (0) target = $region21
    $region20: #{tpu_custom_call.1} parent=1 // pred_region
      %s184 = ssub.s32 128, 128
      %185 = vsyncadd [#allocation4], %s184
      %s186 = sshll.u32 [#allocation7], 4
      %s187 = int_to_ptr.vmem [resolvable:$true] %s186
      %192 = dma.vmem_to_hbm [thread:$0]  %s187, 128, %s2, [#allocation4], 64, 64, 4
    $region21: #{tpu_custom_call.1} parent=1 // pred_fallthru
      _
    // Predicated region
    $region22: #{tpu_custom_call.1} parent=1 // pred_check
      _
    $region23: #{tpu_custom_call.1} parent=1 // pred_check_branch
      %194 = sbr.rel (0) target = $region25
    $region24: #{tpu_custom_call.1} parent=1 // pred_region
      %195 = dma.done [#allocation4], 128
    $region25: #{tpu_custom_call.1} parent=1 // pred_fallthru
      _
    %196 = vsyncpa [#allocation3], 1
    %197 = vsyncpa [#allocation6], 1
    %198 = vsyncpa [#allocation4], 1

</llo_original>
